<compile_context>
chip_gen: v7x
topology: tpu7x:2x2x1
jax: 0.10.0
libtpu: 0.0.40
codegen_flags: <defaults>
</compile_context>

<pallas_src>
import functools

import jax
import jax.numpy as jnp
from jax import lax
from jax.experimental import pallas as pl
from jax.experimental.pallas import tpu as pltpu

_LANE = 128
_SUBLANE = 8
_CHUNK_ROWS = 64          # rows (of 128 pixels) per in-kernel accumulation chunk


def _color_loss_kernel(t_ref, p_ref, o_ref, *, chunk, n_chunks, valid_rows,
                       mask_tail):
    """Accumulate sum(cos_sim) over one (c, tile_m, 128) pixel tile into (8,128)."""
    c = t_ref.shape[0]
    tile_m = chunk * n_chunks
    eps2 = jnp.float32(1e-24)   # F.normalize(eps=1e-12): clamp ||x||^2 at eps^2

    if mask_tail:
        tile_row0 = pl.program_id(1) * tile_m
        # Hoisted out of the chunk loop (JAX does not CSE broadcast/iota).
        sub_iota = lax.broadcasted_iota(jnp.int32, (chunk, _LANE), 0)

    def chunk_body(k, acc):
        base = pl.multiple_of(k * chunk, chunk)
        # Per-channel loads keep the live vreg set small; the channel reduction
        # is plain VPU adds (channels live on the leading, non-layout axis).
        dot = t2 = p2 = None
        for ci in range(c):
            t = t_ref[ci, pl.ds(base, chunk), :].astype(jnp.float32)
            p = p_ref[ci, pl.ds(base, chunk), :].astype(jnp.float32)
            if ci == 0:
                dot, t2, p2 = t * p, t * t, p * p
            else:
                dot, t2, p2 = dot + t * p, t2 + t * t, p2 + p * p
        # rsqrt(max(||x||^2, eps^2)) == 1 / max(||x||, eps); EUP op, no divide.
        cose = (dot * lax.rsqrt(jnp.maximum(t2, eps2))
                    * lax.rsqrt(jnp.maximum(p2, eps2)))
        if mask_tail:
            # The last row-block may extend past the array; its out-of-bounds
            # VMEM rows hold stale data, so zero them *before* accumulating.
            gid = (tile_row0 + base) + sub_iota
            cose = jnp.where(gid < valid_rows, cose, jnp.float32(0.0))
        # Fold (chunk, 128) into (8, 128) with sublane-aligned VPU adds.
        part = cose[0:_SUBLANE]
        for s in range(1, chunk // _SUBLANE):
            part = part + cose[s * _SUBLANE:(s + 1) * _SUBLANE]
        return acc + part

    acc0 = jnp.zeros((_SUBLANE, _LANE), jnp.float32)
    if n_chunks == 1:
        o_ref[...] = chunk_body(jnp.int32(0), acc0)
    else:
        o_ref[...] = lax.fori_loop(0, n_chunks, chunk_body, acc0, unroll=2)


def _pick_tiling(rows, c, itemsize):
    """Balanced pixel-row tiling: returns (n_tiles, tile_m, chunk)."""
    # Per-step budget for the 2x double-buffered input tiles: ~16 MiB
    # (tile_m = 2048 at c=4/f32).  Fits every generation's physical VMEM
    # (v5e/v6e: 128 MiB, v7x: 64 MiB) once vmem_limit_bytes is raised below.
    budget = 16 * 1024 * 1024
    try:  # shrink defensively on chips with less physical VMEM
        budget = min(budget, pltpu.get_tpu_info().vmem_capacity_bytes // 4)
    except Exception:
        pass
    max_rows = max(_SUBLANE, budget // (4 * c * _LANE * itemsize))
    chunk = max(_SUBLANE, min(_CHUNK_ROWS, (max_rows // _SUBLANE) * _SUBLANE))
    max_rows = max(chunk, (max_rows // chunk) * chunk)
    if rows <= chunk:
        return 1, chunk, chunk            # tiny input: one chunk-sized block
    n_tiles = pl.cdiv(rows, max_rows)               # number of grid steps first
    tile_m = pl.cdiv(rows, n_tiles)                 # then balance the tile size
    tile_m = min(pl.cdiv(tile_m, chunk) * chunk,    # chunk-aligned ...
                 (rows // chunk) * chunk)           # ... but never > the array
    n_tiles = pl.cdiv(rows, tile_m)
    return n_tiles, tile_m, chunk


def color_loss2(true_reflect, pred_reflect, loss_weight=1.0):
    """ColorLoss2 forward.  Inputs are NCHW (f32 or bf16); returns scalar f32."""
    b, c, h, w = true_reflect.shape
    hw = h * w
    itemsize = jnp.dtype(true_reflect.dtype).itemsize

    rows = pl.cdiv(hw, _LANE)
    n_tiles, tile_m, chunk = _pick_tiling(rows, c, itemsize)

    # Free NCHW -> (b, c, hw) reshape (no transpose).
    t = true_reflect.reshape(b, c, hw)
    p = pred_reflect.reshape(b, c, hw)

    # No padding when h*w is 128-aligned and at least one tile big (the common
    # case): the last row-block may be partial and is masked in-kernel.  Only
    # ragged h*w (hw % 128 != 0) or tiny images (rows < tile_m) take the
    # zero-pad path; zero pixels give cose == 0 exactly because the eps clamp
    # keeps rsqrt finite.
    # TODO(synk): large ragged h*w still pays one pad copy; an in-kernel
    # lane-tail mask over a 3-D (b, c, hw) layout would avoid it at the cost of
    # a worse channel-reduction layout.
    rows_store = tile_m if rows < tile_m else rows
    hw_store = rows_store * _LANE
    if hw_store != hw:
        pad = ((0, 0), (0, 0), (0, hw_store - hw))
        t = jnp.pad(t, pad)
        p = jnp.pad(p, pad)
    t = t.reshape(b, c, rows_store, _LANE)
    p = p.reshape(b, c, rows_store, _LANE)

    mask_tail = n_tiles * tile_m > rows_store
    kernel = functools.partial(
        _color_loss_kernel, chunk=chunk, n_chunks=tile_m // chunk,
        valid_rows=rows_store, mask_tail=mask_tail)

    in_spec = pl.BlockSpec((None, c, tile_m, _LANE), lambda i, j: (i, 0, j, 0))
    tile_bytes = c * tile_m * _LANE * itemsize
    vmem_limit = int(max(16 << 20, min(4 * tile_bytes + (8 << 20), 48 << 20)))

    partials = pl.pallas_call(
        kernel,
        out_shape=jax.ShapeDtypeStruct((b, n_tiles, _SUBLANE, _LANE),
                                       jnp.float32),
        grid_spec=pltpu.PrefetchScalarGridSpec(
            num_scalar_prefetch=0,
            grid=(b, n_tiles),
            in_specs=[in_spec, in_spec],
            out_specs=pl.BlockSpec((None, None, _SUBLANE, _LANE),
                                   lambda i, j: (i, j, 0, 0)),
        ),
        compiler_params=pltpu.CompilerParams(
            dimension_semantics=("parallel", "parallel"),
            vmem_limit_bytes=vmem_limit),
    )(t, p)

    # Padded pixels contribute exactly 0 and tail rows are masked, so the mean
    # divides by the true pixel count only.
    n_valid = jnp.float32(b * hw)
    return jnp.float32(loss_weight) * (1.0 - jnp.sum(partials) / n_valid)


def _color_loss2_ref(true_reflect, pred_reflect, loss_weight=1.0):
    """Pure-JAX reference mirroring the PyTorch module."""
    b, c, h, w = true_reflect.shape
    tv = jnp.transpose(true_reflect.reshape(b, c, h * w), (0, 2, 1)).astype(jnp.float32)
    pv = jnp.transpose(pred_reflect.reshape(b, c, h * w), (0, 2, 1)).astype(jnp.float32)
    eps = 1e-12
    tn = tv / jnp.maximum(jnp.linalg.norm(tv, axis=-1, keepdims=True), eps)
    pn = pv / jnp.maximum(jnp.linalg.norm(pv, axis=-1, keepdims=True), eps)
    cose = jnp.sum(tn * pn, axis=-1)
    return loss_weight * jnp.mean(1.0 - cose)


if __name__ == "__main__":
    key = jax.random.PRNGKey(0)
    k1, k2 = jax.random.split(key)

    # Primary small shape consistent with the module.
    b, c, h, w = 2, 4, 16, 16
    true_reflect = jax.random.uniform(k1, (b, c, h, w), dtype=jnp.float32)
    pred_reflect = jax.random.uniform(k2, (b, c, h, w), dtype=jnp.float32)
    loss = jax.block_until_ready(color_loss2(true_reflect, pred_reflect, 1.0))
    ref = _color_loss2_ref(true_reflect, pred_reflect, 1.0)
    assert jnp.allclose(loss, ref, atol=1e-5, rtol=1e-5), (loss, ref)

    # Regression shapes exercising the partial-block mask, the chunked
    # fori_loop path, and the ragged-h*w pad fallback.
    for shape in ((1, 3, 96, 96), (1, 4, 128, 130), (1, 3, 60, 50)):
        kk1, kk2, key = jax.random.split(key, 3)
        tr = jax.random.uniform(kk1, shape, dtype=jnp.float32)
        pr = jax.random.uniform(kk2, shape, dtype=jnp.float32)
        got = jax.block_until_ready(color_loss2(tr, pr, 1.0))
        want = _color_loss2_ref(tr, pr, 1.0)
        assert jnp.allclose(got, want, atol=1e-5, rtol=1e-5), (shape, got, want)

    print("KERNEL_OK")
</pallas_src>

<mosaic_0001>
module attributes {stable_mosaic.version = 11 : i64} {
  func.func @_color_loss_kernel(%arg0: i32, %arg1: i32, %arg2: memref<1x4x64x128xf32, #tpu.memory_space<vmem>>, %arg3: memref<1x4x64x128xf32, #tpu.memory_space<vmem>>, %arg4: memref<1x1x8x128xf32, #tpu.memory_space<vmem>>) attributes {dimension_semantics = [#tpu.dimension_semantics<parallel>, #tpu.dimension_semantics<parallel>], iteration_bounds = array<i64: 2, 1>, scalar_prefetch = 0 : i64, scratch_operands = 0 : i64, tpu.core_type = #tpu.core_type<tc>, window_params = [{transform_indices = @transform_0, window_bounds = array<i64: 1, 4, 64, 128>}, {transform_indices = @transform_1, window_bounds = array<i64: 1, 4, 64, 128>}, {transform_indices = @transform_2, window_bounds = array<i64: 1, 1, 8, 128>}]} {
    %cst = arith.constant 0.000000e+00 : f32
    %0 = vector.broadcast %cst : f32 to vector<8x128xf32>
    %c0_i32 = arith.constant 0 : i32
    %c64_i32 = arith.constant 64 : i32
    %1 = arith.muli %c0_i32, %c64_i32 : i32
    %2 = tpu.assume_multiple %1, 64 : i32
    %c0 = arith.constant 0 : index
    %c0_0 = arith.constant 0 : index
    %3 = arith.index_cast %2 : i32 to index
    %c0_1 = arith.constant 0 : index
    %4 = vector.load %arg2[%c0, %c0_0, %3, %c0_1] : memref<1x4x64x128xf32, #tpu.memory_space<vmem>>, vector<1x1x64x128xf32>
    %5 = vector.shape_cast %4 : vector<1x1x64x128xf32> to vector<64x128xf32>
    %c0_2 = arith.constant 0 : index
    %c0_3 = arith.constant 0 : index
    %6 = arith.index_cast %2 : i32 to index
    %c0_4 = arith.constant 0 : index
    %7 = vector.load %arg3[%c0_2, %c0_3, %6, %c0_4] : memref<1x4x64x128xf32, #tpu.memory_space<vmem>>, vector<1x1x64x128xf32>
    %8 = vector.shape_cast %7 : vector<1x1x64x128xf32> to vector<64x128xf32>
    %9 = arith.mulf %5, %8 : vector<64x128xf32>
    %10 = arith.mulf %5, %5 : vector<64x128xf32>
    %11 = arith.mulf %8, %8 : vector<64x128xf32>
    %c0_5 = arith.constant 0 : index
    %c1 = arith.constant 1 : index
    %12 = arith.index_cast %2 : i32 to index
    %c0_6 = arith.constant 0 : index
    %13 = vector.load %arg2[%c0_5, %c1, %12, %c0_6] : memref<1x4x64x128xf32, #tpu.memory_space<vmem>>, vector<1x1x64x128xf32>
    %14 = vector.shape_cast %13 : vector<1x1x64x128xf32> to vector<64x128xf32>
    %c0_7 = arith.constant 0 : index
    %c1_8 = arith.constant 1 : index
    %15 = arith.index_cast %2 : i32 to index
    %c0_9 = arith.constant 0 : index
    %16 = vector.load %arg3[%c0_7, %c1_8, %15, %c0_9] : memref<1x4x64x128xf32, #tpu.memory_space<vmem>>, vector<1x1x64x128xf32>
    %17 = vector.shape_cast %16 : vector<1x1x64x128xf32> to vector<64x128xf32>
    %18 = arith.mulf %14, %17 : vector<64x128xf32>
    %19 = arith.addf %9, %18 : vector<64x128xf32>
    %20 = arith.mulf %14, %14 : vector<64x128xf32>
    %21 = arith.addf %10, %20 : vector<64x128xf32>
    %22 = arith.mulf %17, %17 : vector<64x128xf32>
    %23 = arith.addf %11, %22 : vector<64x128xf32>
    %c0_10 = arith.constant 0 : index
    %c2 = arith.constant 2 : index
    %24 = arith.index_cast %2 : i32 to index
    %c0_11 = arith.constant 0 : index
    %25 = vector.load %arg2[%c0_10, %c2, %24, %c0_11] : memref<1x4x64x128xf32, #tpu.memory_space<vmem>>, vector<1x1x64x128xf32>
    %26 = vector.shape_cast %25 : vector<1x1x64x128xf32> to vector<64x128xf32>
    %c0_12 = arith.constant 0 : index
    %c2_13 = arith.constant 2 : index
    %27 = arith.index_cast %2 : i32 to index
    %c0_14 = arith.constant 0 : index
    %28 = vector.load %arg3[%c0_12, %c2_13, %27, %c0_14] : memref<1x4x64x128xf32, #tpu.memory_space<vmem>>, vector<1x1x64x128xf32>
    %29 = vector.shape_cast %28 : vector<1x1x64x128xf32> to vector<64x128xf32>
    %30 = arith.mulf %26, %29 : vector<64x128xf32>
    %31 = arith.addf %19, %30 : vector<64x128xf32>
    %32 = arith.mulf %26, %26 : vector<64x128xf32>
    %33 = arith.addf %21, %32 : vector<64x128xf32>
    %34 = arith.mulf %29, %29 : vector<64x128xf32>
    %35 = arith.addf %23, %34 : vector<64x128xf32>
    %c0_15 = arith.constant 0 : index
    %c3 = arith.constant 3 : index
    %36 = arith.index_cast %2 : i32 to index
    %c0_16 = arith.constant 0 : index
    %37 = vector.load %arg2[%c0_15, %c3, %36, %c0_16] : memref<1x4x64x128xf32, #tpu.memory_space<vmem>>, vector<1x1x64x128xf32>
    %38 = vector.shape_cast %37 : vector<1x1x64x128xf32> to vector<64x128xf32>
    %c0_17 = arith.constant 0 : index
    %c3_18 = arith.constant 3 : index
    %39 = arith.index_cast %2 : i32 to index
    %c0_19 = arith.constant 0 : index
    %40 = vector.load %arg3[%c0_17, %c3_18, %39, %c0_19] : memref<1x4x64x128xf32, #tpu.memory_space<vmem>>, vector<1x1x64x128xf32>
    %41 = vector.shape_cast %40 : vector<1x1x64x128xf32> to vector<64x128xf32>
    %42 = arith.mulf %38, %41 : vector<64x128xf32>
    %43 = arith.addf %31, %42 : vector<64x128xf32>
    %44 = arith.mulf %38, %38 : vector<64x128xf32>
    %45 = arith.addf %33, %44 : vector<64x128xf32>
    %46 = arith.mulf %41, %41 : vector<64x128xf32>
    %47 = arith.addf %35, %46 : vector<64x128xf32>
    %cst_20 = arith.constant 1.000000e-24 : f32
    %48 = vector.broadcast %cst_20 : f32 to vector<64x128xf32>
    %49 = arith.maximumf %45, %48 : vector<64x128xf32>
    %50 = math.rsqrt %49 : vector<64x128xf32>
    %51 = arith.mulf %43, %50 : vector<64x128xf32>
    %cst_21 = arith.constant 1.000000e-24 : f32
    %52 = vector.broadcast %cst_21 : f32 to vector<64x128xf32>
    %53 = arith.maximumf %47, %52 : vector<64x128xf32>
    %54 = math.rsqrt %53 : vector<64x128xf32>
    %55 = arith.mulf %51, %54 : vector<64x128xf32>
    %56 = vector.extract_strided_slice %55 {offsets = [0, 0], sizes = [8, 128], strides = [1, 1]} : vector<64x128xf32> to vector<8x128xf32>
    %57 = vector.extract_strided_slice %55 {offsets = [8, 0], sizes = [8, 128], strides = [1, 1]} : vector<64x128xf32> to vector<8x128xf32>
    %58 = arith.addf %56, %57 : vector<8x128xf32>
    %59 = vector.extract_strided_slice %55 {offsets = [16, 0], sizes = [8, 128], strides = [1, 1]} : vector<64x128xf32> to vector<8x128xf32>
    %60 = arith.addf %58, %59 : vector<8x128xf32>
    %61 = vector.extract_strided_slice %55 {offsets = [24, 0], sizes = [8, 128], strides = [1, 1]} : vector<64x128xf32> to vector<8x128xf32>
    %62 = arith.addf %60, %61 : vector<8x128xf32>
    %63 = vector.extract_strided_slice %55 {offsets = [32, 0], sizes = [8, 128], strides = [1, 1]} : vector<64x128xf32> to vector<8x128xf32>
    %64 = arith.addf %62, %63 : vector<8x128xf32>
    %65 = vector.extract_strided_slice %55 {offsets = [40, 0], sizes = [8, 128], strides = [1, 1]} : vector<64x128xf32> to vector<8x128xf32>
    %66 = arith.addf %64, %65 : vector<8x128xf32>
    %67 = vector.extract_strided_slice %55 {offsets = [48, 0], sizes = [8, 128], strides = [1, 1]} : vector<64x128xf32> to vector<8x128xf32>
    %68 = arith.addf %66, %67 : vector<8x128xf32>
    %69 = vector.extract_strided_slice %55 {offsets = [56, 0], sizes = [8, 128], strides = [1, 1]} : vector<64x128xf32> to vector<8x128xf32>
    %70 = arith.addf %68, %69 : vector<8x128xf32>
    %71 = arith.addf %0, %70 : vector<8x128xf32>
    %c0_22 = arith.constant 0 : index
    %c0_23 = arith.constant 0 : index
    %c0_24 = arith.constant 0 : index
    %c0_25 = arith.constant 0 : index
    %72 = vector.load %arg4[%c0_22, %c0_23, %c0_24, %c0_25] : memref<1x1x8x128xf32, #tpu.memory_space<vmem>>, vector<1x1x8x128xf32>
    %73 = vector.shape_cast %72 : vector<1x1x8x128xf32> to vector<8x128xf32>
    %74 = vector.shape_cast %71 : vector<8x128xf32> to vector<1x1x8x128xf32>
    tpu.vector_store %arg4[%c0_22, %c0_23, %c0_24, %c0_25], %74 {strides = array<i32>} : memref<1x1x8x128xf32, #tpu.memory_space<vmem>>, vector<1x1x8x128xf32>,
    return
  }
  func.func @transform_0(%arg0: i32, %arg1: i32) -> (i32, i32, i32, i32) {
    %c0_i32 = arith.constant 0 : i32
    %c0_i32_0 = arith.constant 0 : i32
    %c0_i32_1 = arith.constant 0 : i32
    return %arg0, %c0_i32, %arg1, %c0_i32_0 : i32, i32, i32, i32
  }
  func.func @transform_1(%arg0: i32, %arg1: i32) -> (i32, i32, i32, i32) {
    %c0_i32 = arith.constant 0 : i32
    %c0_i32_0 = arith.constant 0 : i32
    %c0_i32_1 = arith.constant 0 : i32
    return %arg0, %c0_i32, %arg1, %c0_i32_0 : i32, i32, i32, i32
  }
  func.func @transform_2(%arg0: i32, %arg1: i32) -> (i32, i32, i32, i32) {
    %c0_i32 = arith.constant 0 : i32
    %c0_i32_0 = arith.constant 0 : i32
    %c0_i32_1 = arith.constant 0 : i32
    return %arg0, %arg1, %c0_i32, %c0_i32_0 : i32, i32, i32, i32
  }
}

</mosaic_0001>

<llo_original>
// kernel: tpu_custom_call.1
$region0: #{tpu_custom_call.1}
  #allocation0 [shape = 'u32[]', space=smem, size = 0x4, offset = 0x4, fixed_abs, tag = 'smem constant byte address 0x4 - core index']
  #allocation1 [shape = 'u32[144,128]{1,0:T(1,128)}', space=vmem, size = 0x12000, scoped, tag = 'internal scratch']
  %s0 = inlined_call_operand.hbm [shape: f32[2,4,64,128], index: 0, kind: input, shape index: {}]
  %s1 = inlined_call_operand.hbm [shape: f32[2,4,64,128], index: 1, kind: input, shape index: {}]
  %s2 = inlined_call_operand.hbm [shape: f32[2,1,8,128], index: 2, kind: output, shape index: {}]
  %s3 = sld [smem:[#allocation0]]
  $region49: #{tpu_custom_call.1} parent=0
    _
  %s5 = ssub.s32 1, %s3
  %s6 = scalar_select 0, %s5, %s3
  $region1: #{tpu_custom_call.1} parent=0
    #allocation2 [shape = 'u8[262144]{0}', space=vmem, size = 0x40000, scoped, tag = 'input window, operand 0']
    #allocation3 [shape = 's32[2]{0}', space=sflag, size = 0x8, scoped, tag = 'scoped memory for tpu_custom_call.1']
    #allocation4 [shape = 's32[2]{0}', space=sflag, size = 0x8, scoped, tag = 'scoped memory for tpu_custom_call.1']
    #allocation5 [shape = 'u8[262144]{0}', space=vmem, size = 0x40000, scoped, tag = 'input window, operand 1']
    #allocation6 [shape = 's32[2]{0}', space=sflag, size = 0x8, scoped, tag = 'scoped memory for tpu_custom_call.1']
    #allocation7 [shape = 'u8[8192]{0}', space=vmem, size = 0x2000, scoped, tag = 'output window, operand 0']
    %7 = vsyncpa [#allocation3], 0
    %s8 = scalar_lea.sflag [#allocation3], 1
    %9 = vsyncpa %s8, 0
    %10 = vsyncpa [#allocation6], 0
    %s11 = scalar_lea.sflag [#allocation6], 1
    %12 = vsyncpa %s11, 0
    %13 = vsyncpa [#allocation4], 0
    %s14 = scalar_lea.sflag [#allocation4], 1
    %15 = vsyncpa %s14, 0
    loop: start=0, step=1, limit=4
    $region2: #{tpu_custom_call.1} parent=1 // loop_pre_header
      _
    $region3: #{tpu_custom_call.1} parent=1 // loop_header
      %s17 = sphi 0, %s21
      %p18 = scmp.ge.s32.totalorder %s17, 4
      %s24 = sphi 0, %s36
      %s25 = sphi 0, %s32
      %s26 = sphi 0, %s24
      %s27 = sphi 0, %s25
      %s28 = sphi 0, %s26
      %s29 = sphi 0, %s27
      %s41 = sphi 0, %s43
      %s44 = sphi 0, %s41
      %s45 = sphi 0, %s44
      %s61 = sphi 0, %s45
      %s69 = sphi 0, %s71
      %s72 = sphi 0, %s69
      %s73 = sphi 0, %s72
      %s89 = sphi 0, %s73
      %s97 = sphi 0, %s99
      %s100 = sphi 0, %s97
      %s101 = sphi 0, %s100
      %s117 = sphi 0, %s101
    $region4: #{tpu_custom_call.1} parent=1 // loop_header_branch
      %20 = sbr.rel (%p18) target = $region8
    $region5: #{tpu_custom_call.1} parent=1 // loop_body
      %s22 = ssub.s32 %s17, 1
      %s23 = ssub.s32 %s17, 2
      %s30 = sadd.s32 1, %s25
      %p31 = scmp.ge.s32.totalorder %s30, 1
      %s32 = scalar_select %p31, 0, %s30
      %s33 = sadd.s32 1, %s24
      %s34 = scalar_select %p31, %s33, %s24
      %p35 = scmp.ge.s32.totalorder %s34, 2
      %s36 = scalar_select %p35, 0, %s34
      %s37 = ssub.s32 %s24, %s36
      %s38 = ssub.s32 %s25, %s32
      %s39 = sor.u32 %s37, %s38
      %p40 = scmp.eq.s32.totalorder %s39, 0
      %s42 = sadd.s32 %s41, 1
      %s43 = scalar_select %p40, %s41, %s42
      %p46 = pneg %p40
      %p47 = scmp.eq.s32.totalorder %s17, 1
      %p48 = por %p46, %p47
      %p49 = scmp.ne.s32.totalorder %s41, %s44
      %p50 = scmp.eq.s32.totalorder %s17, 0
      %p51 = por %p49, %p50
      %p52 = scmp.ne.s32.totalorder %s41, %s44
      %p53 = scmp.eq.s32.totalorder %s22, 1
      %p54 = por %p52, %p53
      %p55 = scmp.ne.s32.totalorder %s44, %s45
      %p56 = scmp.eq.s32.totalorder %s22, 0
      %p57 = por %p55, %p56
      %p58 = scmp.ne.s32.totalorder %s44, %s45
      %p59 = scmp.eq.s32.totalorder %s23, 1
      %p60 = por %p58, %p59
      %p62 = scmp.ne.s32.totalorder %s45, %s61
      %p63 = scmp.eq.s32.totalorder %s23, 0
      %p64 = por %p62, %p63
      %s65 = ssub.s32 %s24, %s36
      %s66 = ssub.s32 %s25, %s32
      %s67 = sor.u32 %s65, %s66
      %p68 = scmp.eq.s32.totalorder %s67, 0
      %s70 = sadd.s32 %s69, 1
      %s71 = scalar_select %p68, %s69, %s70
      %p74 = pneg %p68
      %p75 = scmp.eq.s32.totalorder %s17, 1
      %p76 = por %p74, %p75
      %p77 = scmp.ne.s32.totalorder %s69, %s72
      %p78 = scmp.eq.s32.totalorder %s17, 0
      %p79 = por %p77, %p78
      %p80 = scmp.ne.s32.totalorder %s69, %s72
      %p81 = scmp.eq.s32.totalorder %s22, 1
      %p82 = por %p80, %p81
      %p83 = scmp.ne.s32.totalorder %s72, %s73
      %p84 = scmp.eq.s32.totalorder %s22, 0
      %p85 = por %p83, %p84
      %p86 = scmp.ne.s32.totalorder %s72, %s73
      %p87 = scmp.eq.s32.totalorder %s23, 1
      %p88 = por %p86, %p87
      %p90 = scmp.ne.s32.totalorder %s73, %s89
      %p91 = scmp.eq.s32.totalorder %s23, 0
      %p92 = por %p90, %p91
      %s93 = ssub.s32 %s24, %s36
      %s94 = ssub.s32 %s25, %s32
      %s95 = sor.u32 %s93, %s94
      %p96 = scmp.eq.s32.totalorder %s95, 0
      %s98 = sadd.s32 %s97, 1
      %s99 = scalar_select %p96, %s97, %s98
      %p102 = pneg %p96
      %p103 = scmp.eq.s32.totalorder %s17, 1
      %p104 = por %p102, %p103
      %p105 = scmp.ne.s32.totalorder %s97, %s100
      %p106 = scmp.eq.s32.totalorder %s17, 0
      %p107 = por %p105, %p106
      %p108 = scmp.ne.s32.totalorder %s97, %s100
      %p109 = scmp.eq.s32.totalorder %s22, 1
      %p110 = por %p108, %p109
      %p111 = scmp.ne.s32.totalorder %s100, %s101
      %p112 = scmp.eq.s32.totalorder %s22, 0
      %p113 = por %p111, %p112
      %p114 = scmp.ne.s32.totalorder %s100, %s101
      %p115 = scmp.eq.s32.totalorder %s23, 1
      %p116 = por %p114, %p115
      %p118 = scmp.ne.s32.totalorder %s101, %s117
      %p119 = scmp.eq.s32.totalorder %s23, 0
      %p120 = por %p118, %p119
      %p121 = scmp.le.s32.totalorder 1, %s17
      %p122 = scmp.lt.s32.totalorder %s17, 3
      %p123 = pnand %p121, %p122
      %p124 = pneg %p123
      // Predicated region
      $region9: #{tpu_custom_call.1} parent=5 // pred_check
        _
      $region10: #{tpu_custom_call.1} parent=5 // pred_check_branch
        %126 = sbr.rel (%p123) target = $region12
      $region11: #{tpu_custom_call.1} parent=5 // pred_region
        %s127 = ssub.s32 %s17, 1
      $region12: #{tpu_custom_call.1} parent=5 // pred_fallthru
        _
      %p128 = scmp.lt.s32.totalorder %s17, 2
      // Predicated region
      $region13: #{tpu_custom_call.1} parent=5 // pred_check
        %p129 = pneg %p128
      $region14: #{tpu_custom_call.1} parent=5 // pred_check_branch
        %131 = sbr.rel (%p129) target = $region16
      $region15: #{tpu_custom_call.1} parent=5 // pred_region
        // Predicated region
        $region17: #{tpu_custom_call.1} parent=15 // pred_check
          %p132 = pneg %p51
        $region18: #{tpu_custom_call.1} parent=15 // pred_check_branch
          %134 = sbr.rel (%p132) target = $region20
        $region19: #{tpu_custom_call.1} parent=15 // pred_region
          %s135 = sand.u32 %s41, 1
          %s136 = scalar_lea.sflag [#allocation3], %s135
          %s137 = sand.u32 %s41, 1
          %s138 = smul.addr %s137, 256
          %s139 = scalar_lea.vmem [#allocation2], %s138
          %s140 = smul.u32 8, %s25
          %s142 = ssub.s32 4096, 4096
          %143 = vsyncadd %s136, %s142
          %s144 = smul.addr %s24, 32
          %s145 = sadd.s32 %s140, %s144
          %s146 = smul.addr %s145, 128
          %s147 = scalar_lea.hbm %s0, %s146
          %s148 = sshll.u32 %s139, 4
          %s149 = int_to_ptr.vmem [resolvable:$true] %s148
          %154 = dma.hbm_to_vmem [thread:$0]  %s147, 4096, %s149, %s136, 128, 128, 8
        $region20: #{tpu_custom_call.1} parent=15 // pred_fallthru
          _
        // Predicated region
        $region21: #{tpu_custom_call.1} parent=15 // pred_check
          %p155 = pneg %p79
        $region22: #{tpu_custom_call.1} parent=15 // pred_check_branch
          %157 = sbr.rel (%p155) target = $region24
        $region23: #{tpu_custom_call.1} parent=15 // pred_region
          %s158 = sand.u32 %s69, 1
          %s159 = scalar_lea.sflag [#allocation6], %s158
          %s160 = sand.u32 %s69, 1
          %s161 = smul.addr %s160, 256
          %s162 = scalar_lea.vmem [#allocation5], %s161
          %s163 = smul.u32 8, %s25
          %s165 = ssub.s32 4096, 4096
          %166 = vsyncadd %s159, %s165
          %s167 = smul.addr %s24, 32
          %s168 = sadd.s32 %s163, %s167
          %s169 = smul.addr %s168, 128
          %s170 = scalar_lea.hbm %s1, %s169
          %s171 = sshll.u32 %s162, 4
          %s172 = int_to_ptr.vmem [resolvable:$true] %s171
          %177 = dma.hbm_to_vmem [thread:$0]  %s170, 4096, %s172, %s159, 128, 128, 8
        $region24: #{tpu_custom_call.1} parent=15 // pred_fallthru
          _
      $region16: #{tpu_custom_call.1} parent=5 // pred_fallthru
        _
      %p178 = scmp.le.s32.totalorder 1, %s17
      %p179 = scmp.lt.s32.totalorder %s17, 3
      %p180 = pnand %p178, %p179
      %p181 = pneg %p180
      // Predicated region
      $region25: #{tpu_custom_call.1} parent=5 // pred_check
        _
      $region26: #{tpu_custom_call.1} parent=5 // pred_check_branch
        %183 = sbr.rel (%p180) target = $region28
      $region27: #{tpu_custom_call.1} parent=5 // pred_region
        %s184 = ssub.s32 %s17, 1
        %s185 = sand.u32 %s44, 1
        %s186 = scalar_lea.sflag [#allocation3], %s185
        %s187 = sand.u32 %s44, 1
        %s188 = smul.addr %s187, 256
        %s189 = scalar_lea.vmem [#allocation2], %s188
        // Predicated region
        $region29: #{tpu_custom_call.1} parent=27 // pred_check
          %p190 = pneg %p57
        $region30: #{tpu_custom_call.1} parent=27 // pred_check_branch
          %192 = sbr.rel (%p190) target = $region32
        $region31: #{tpu_custom_call.1} parent=27 // pred_region
          %193 = dma.done %s186, 4096
        $region32: #{tpu_custom_call.1} parent=27 // pred_fallthru
          _
        %s194 = sand.u32 %s72, 1
        %s195 = scalar_lea.sflag [#allocation6], %s194
        %s196 = sand.u32 %s72, 1
        %s197 = smul.addr %s196, 256
        %s198 = scalar_lea.vmem [#allocation5], %s197
        // Predicated region
        $region33: #{tpu_custom_call.1} parent=27 // pred_check
          %p199 = pneg %p85
        $region34: #{tpu_custom_call.1} parent=27 // pred_check_branch
          %201 = sbr.rel (%p199) target = $region36
        $region35: #{tpu_custom_call.1} parent=27 // pred_region
          %202 = dma.done %s195, 4096
        $region36: #{tpu_custom_call.1} parent=27 // pred_fallthru
          _
        %s203 = sand.u32 %s44, 1
        %s204 = scalar_lea.sflag [#allocation3], %s203
        %s205 = sand.u32 %s44, 1
        %s206 = smul.addr %s205, 256
        %s207 = scalar_lea.vmem [#allocation2], %s206
        %p208 = pneg %p57
        %p209 = pneg %p54
        %s210 = sand.u32 %s72, 1
        %s211 = scalar_lea.sflag [#allocation6], %s210
        %s212 = sand.u32 %s72, 1
        %s213 = smul.addr %s212, 256
        %s214 = scalar_lea.vmem [#allocation5], %s213
        %p215 = pneg %p85
        %p216 = pneg %p82
        %p217 = pneg %p113
        %p218 = pneg %p110
        %s219 = sand.u32 %s100, 1
        %s220 = scalar_lea.sflag [#allocation4], %s219
        %s221 = sand.u32 %s100, 1
        %s222 = smul.addr %s221, 8
        %s223 = scalar_lea.vmem [#allocation7], %s222
        %s224 = smul.u32 8, %s27
        %s225 = smul.u32 8, %s27
        %v226 = vld [vmem:[%s189] sm:$0xff]
        %v227 = vld [vmem:[%s189 + $0x8] sm:$0xff]
        %v228 = vld [vmem:[%s189 + $0x10] sm:$0xff]
        %v229 = vld [vmem:[%s189 + $0x18] sm:$0xff]
        %v230 = vld [vmem:[%s189 + $0x20] sm:$0xff]
        %v231 = vld [vmem:[%s189 + $0x28] sm:$0xff]
        %v232 = vld [vmem:[%s189 + $0x30] sm:$0xff]
        %v233 = vld [vmem:[%s189 + $0x38] sm:$0xff]
        %v234 = vld [vmem:[%s198] sm:$0xff]
        %v235 = vld [vmem:[%s198 + $0x8] sm:$0xff]
        %v236 = vld [vmem:[%s198 + $0x10] sm:$0xff]
        %v237 = vld [vmem:[%s198 + $0x18] sm:$0xff]
        %v238 = vld [vmem:[%s198 + $0x20] sm:$0xff]
        %v239 = vld [vmem:[%s198 + $0x28] sm:$0xff]
        %v240 = vld [vmem:[%s198 + $0x30] sm:$0xff]
        %v241 = vld [vmem:[%s198 + $0x38] sm:$0xff]
        %v242 = vmul.f32 %v226, %v234
        %v243 = vmul.f32 %v227, %v235
        %v244 = vmul.f32 %v228, %v236
        %v245 = vmul.f32 %v229, %v237
        %v246 = vmul.f32 %v230, %v238
        %v247 = vmul.f32 %v231, %v239
        %v248 = vmul.f32 %v232, %v240
        %v249 = vmul.f32 %v233, %v241
        %v250 = vmul.f32 %v226, %v226
        %v251 = vmul.f32 %v227, %v227
        %v252 = vmul.f32 %v228, %v228
        %v253 = vmul.f32 %v229, %v229
        %v254 = vmul.f32 %v230, %v230
        %v255 = vmul.f32 %v231, %v231
        %v256 = vmul.f32 %v232, %v232
        %v257 = vmul.f32 %v233, %v233
        %v258 = vmul.f32 %v234, %v234
        %v259 = vmul.f32 %v235, %v235
        %v260 = vmul.f32 %v236, %v236
        %v261 = vmul.f32 %v237, %v237
        %v262 = vmul.f32 %v238, %v238
        %v263 = vmul.f32 %v239, %v239
        %v264 = vmul.f32 %v240, %v240
        %v265 = vmul.f32 %v241, %v241
        %s266 = sadd.s32 0, 64
        %s267 = scalar_lea.vmem %s189, %s266 [#allocation2]
        %v268 = vld [vmem:[%s267] sm:$0xff]
        %v269 = vld [vmem:[%s267 + $0x8] sm:$0xff]
        %v270 = vld [vmem:[%s267 + $0x10] sm:$0xff]
        %v271 = vld [vmem:[%s267 + $0x18] sm:$0xff]
        %v272 = vld [vmem:[%s267 + $0x20] sm:$0xff]
        %v273 = vld [vmem:[%s267 + $0x28] sm:$0xff]
        %v274 = vld [vmem:[%s267 + $0x30] sm:$0xff]
        %v275 = vld [vmem:[%s267 + $0x38] sm:$0xff]
        %s276 = scalar_lea.vmem %s198, %s266 [#allocation5]
        %v277 = vld [vmem:[%s276] sm:$0xff]
        %v278 = vld [vmem:[%s276 + $0x8] sm:$0xff]
        %v279 = vld [vmem:[%s276 + $0x10] sm:$0xff]
        %v280 = vld [vmem:[%s276 + $0x18] sm:$0xff]
        %v281 = vld [vmem:[%s276 + $0x20] sm:$0xff]
        %v282 = vld [vmem:[%s276 + $0x28] sm:$0xff]
        %v283 = vld [vmem:[%s276 + $0x30] sm:$0xff]
        %v284 = vld [vmem:[%s276 + $0x38] sm:$0xff]
        %v285 = vmul.f32 %v268, %v277
        %v286 = vmul.f32 %v269, %v278
        %v287 = vmul.f32 %v270, %v279
        %v288 = vmul.f32 %v271, %v280
        %v289 = vmul.f32 %v272, %v281
        %v290 = vmul.f32 %v273, %v282
        %v291 = vmul.f32 %v274, %v283
        %v292 = vmul.f32 %v275, %v284
        %v293 = vadd.f32 %v242, %v285
        %v294 = vadd.f32 %v243, %v286
        %v295 = vadd.f32 %v244, %v287
        %v296 = vadd.f32 %v245, %v288
        %v297 = vadd.f32 %v246, %v289
        %v298 = vadd.f32 %v247, %v290
        %v299 = vadd.f32 %v248, %v291
        %v300 = vadd.f32 %v249, %v292
        %v301 = vmul.f32 %v268, %v268
        %v302 = vmul.f32 %v269, %v269
        %v303 = vmul.f32 %v270, %v270
        %v304 = vmul.f32 %v271, %v271
        %v305 = vmul.f32 %v272, %v272
        %v306 = vmul.f32 %v273, %v273
        %v307 = vmul.f32 %v274, %v274
        %v308 = vmul.f32 %v275, %v275
        %v309 = vadd.f32 %v250, %v301
        %v310 = vadd.f32 %v251, %v302
        %v311 = vadd.f32 %v252, %v303
        %v312 = vadd.f32 %v253, %v304
        %v313 = vadd.f32 %v254, %v305
        %v314 = vadd.f32 %v255, %v306
        %v315 = vadd.f32 %v256, %v307
        %v316 = vadd.f32 %v257, %v308
        %v317 = vmul.f32 %v277, %v277
        %v318 = vmul.f32 %v278, %v278
        %v319 = vmul.f32 %v279, %v279
        %v320 = vmul.f32 %v280, %v280
        %v321 = vmul.f32 %v281, %v281
        %v322 = vmul.f32 %v282, %v282
        %v323 = vmul.f32 %v283, %v283
        %v324 = vmul.f32 %v284, %v284
        %v325 = vadd.f32 %v258, %v317
        %v326 = vadd.f32 %v259, %v318
        %v327 = vadd.f32 %v260, %v319
        %v328 = vadd.f32 %v261, %v320
        %v329 = vadd.f32 %v262, %v321
        %v330 = vadd.f32 %v263, %v322
        %v331 = vadd.f32 %v264, %v323
        %v332 = vadd.f32 %v265, %v324
        %s333 = sadd.s32 0, 128
        %s334 = scalar_lea.vmem %s189, %s333 [#allocation2]
        %v335 = vld [vmem:[%s334] sm:$0xff]
        %v336 = vld [vmem:[%s334 + $0x8] sm:$0xff]
        %v337 = vld [vmem:[%s334 + $0x10] sm:$0xff]
        %v338 = vld [vmem:[%s334 + $0x18] sm:$0xff]
        %v339 = vld [vmem:[%s334 + $0x20] sm:$0xff]
        %v340 = vld [vmem:[%s334 + $0x28] sm:$0xff]
        %v341 = vld [vmem:[%s334 + $0x30] sm:$0xff]
        %v342 = vld [vmem:[%s334 + $0x38] sm:$0xff]
        %s343 = scalar_lea.vmem %s198, %s333 [#allocation5]
        %v344 = vld [vmem:[%s343] sm:$0xff]
        %v345 = vld [vmem:[%s343 + $0x8] sm:$0xff]
        %v346 = vld [vmem:[%s343 + $0x10] sm:$0xff]
        %v347 = vld [vmem:[%s343 + $0x18] sm:$0xff]
        %v348 = vld [vmem:[%s343 + $0x20] sm:$0xff]
        %v349 = vld [vmem:[%s343 + $0x28] sm:$0xff]
        %v350 = vld [vmem:[%s343 + $0x30] sm:$0xff]
        %v351 = vld [vmem:[%s343 + $0x38] sm:$0xff]
        %v352 = vmul.f32 %v335, %v344
        %v353 = vmul.f32 %v336, %v345
        %v354 = vmul.f32 %v337, %v346
        %v355 = vmul.f32 %v338, %v347
        %v356 = vmul.f32 %v339, %v348
        %v357 = vmul.f32 %v340, %v349
        %v358 = vmul.f32 %v341, %v350
        %v359 = vmul.f32 %v342, %v351
        %v360 = vadd.f32 %v293, %v352
        %v361 = vadd.f32 %v294, %v353
        %v362 = vadd.f32 %v295, %v354
        %v363 = vadd.f32 %v296, %v355
        %v364 = vadd.f32 %v297, %v356
        %v365 = vadd.f32 %v298, %v357
        %v366 = vadd.f32 %v299, %v358
        %v367 = vadd.f32 %v300, %v359
        %v368 = vmul.f32 %v335, %v335
        %v369 = vmul.f32 %v336, %v336
        %v370 = vmul.f32 %v337, %v337
        %v371 = vmul.f32 %v338, %v338
        %v372 = vmul.f32 %v339, %v339
        %v373 = vmul.f32 %v340, %v340
        %v374 = vmul.f32 %v341, %v341
        %v375 = vmul.f32 %v342, %v342
        %v376 = vadd.f32 %v309, %v368
        %v377 = vadd.f32 %v310, %v369
        %v378 = vadd.f32 %v311, %v370
        %v379 = vadd.f32 %v312, %v371
        %v380 = vadd.f32 %v313, %v372
        %v381 = vadd.f32 %v314, %v373
        %v382 = vadd.f32 %v315, %v374
        %v383 = vadd.f32 %v316, %v375
        %v384 = vmul.f32 %v344, %v344
        %v385 = vmul.f32 %v345, %v345
        %v386 = vmul.f32 %v346, %v346
        %v387 = vmul.f32 %v347, %v347
        %v388 = vmul.f32 %v348, %v348
        %v389 = vmul.f32 %v349, %v349
        %v390 = vmul.f32 %v350, %v350
        %v391 = vmul.f32 %v351, %v351
        %v392 = vadd.f32 %v325, %v384
        %v393 = vadd.f32 %v326, %v385
        %v394 = vadd.f32 %v327, %v386
        %v395 = vadd.f32 %v328, %v387
        %v396 = vadd.f32 %v329, %v388
        %v397 = vadd.f32 %v330, %v389
        %v398 = vadd.f32 %v331, %v390
        %v399 = vadd.f32 %v332, %v391
        %s400 = sadd.s32 0, 192
        %s401 = scalar_lea.vmem %s189, %s400 [#allocation2]
        %v402 = vld [vmem:[%s401] sm:$0xff]
        %v403 = vld [vmem:[%s401 + $0x8] sm:$0xff]
        %v404 = vld [vmem:[%s401 + $0x10] sm:$0xff]
        %v405 = vld [vmem:[%s401 + $0x18] sm:$0xff]
        %v406 = vld [vmem:[%s401 + $0x20] sm:$0xff]
        %v407 = vld [vmem:[%s401 + $0x28] sm:$0xff]
        %v408 = vld [vmem:[%s401 + $0x30] sm:$0xff]
        %v409 = vld [vmem:[%s401 + $0x38] sm:$0xff]
        %s410 = scalar_lea.vmem %s198, %s400 [#allocation5]
        %v411 = vld [vmem:[%s410] sm:$0xff]
        %v412 = vld [vmem:[%s410 + $0x8] sm:$0xff]
        %v413 = vld [vmem:[%s410 + $0x10] sm:$0xff]
        %v414 = vld [vmem:[%s410 + $0x18] sm:$0xff]
        %v415 = vld [vmem:[%s410 + $0x20] sm:$0xff]
        %v416 = vld [vmem:[%s410 + $0x28] sm:$0xff]
        %v417 = vld [vmem:[%s410 + $0x30] sm:$0xff]
        %v418 = vld [vmem:[%s410 + $0x38] sm:$0xff]
        %v419 = vmul.f32 %v402, %v411
        %v420 = vmul.f32 %v403, %v412
        %v421 = vmul.f32 %v404, %v413
        %v422 = vmul.f32 %v405, %v414
        %v423 = vmul.f32 %v406, %v415
        %v424 = vmul.f32 %v407, %v416
        %v425 = vmul.f32 %v408, %v417
        %v426 = vmul.f32 %v409, %v418
        %v427 = vadd.f32 %v360, %v419
        %v428 = vadd.f32 %v361, %v420
        %v429 = vadd.f32 %v362, %v421
        %v430 = vadd.f32 %v363, %v422
        %v431 = vadd.f32 %v364, %v423
        %v432 = vadd.f32 %v365, %v424
        %v433 = vadd.f32 %v366, %v425
        %v434 = vadd.f32 %v367, %v426
        %v435 = vmul.f32 %v402, %v402
        %v436 = vmul.f32 %v403, %v403
        %v437 = vmul.f32 %v404, %v404
        %v438 = vmul.f32 %v405, %v405
        %v439 = vmul.f32 %v406, %v406
        %v440 = vmul.f32 %v407, %v407
        %v441 = vmul.f32 %v408, %v408
        %v442 = vmul.f32 %v409, %v409
        %v443 = vadd.f32 %v376, %v435
        %v444 = vadd.f32 %v377, %v436
        %v445 = vadd.f32 %v378, %v437
        %v446 = vadd.f32 %v379, %v438
        %v447 = vadd.f32 %v380, %v439
        %v448 = vadd.f32 %v381, %v440
        %v449 = vadd.f32 %v382, %v441
        %v450 = vadd.f32 %v383, %v442
        %v451 = vmul.f32 %v411, %v411
        %v452 = vmul.f32 %v412, %v412
        %v453 = vmul.f32 %v413, %v413
        %v454 = vmul.f32 %v414, %v414
        %v455 = vmul.f32 %v415, %v415
        %v456 = vmul.f32 %v416, %v416
        %v457 = vmul.f32 %v417, %v417
        %v458 = vmul.f32 %v418, %v418
        %v459 = vadd.f32 %v392, %v451
        %v460 = vadd.f32 %v393, %v452
        %v461 = vadd.f32 %v394, %v453
        %v462 = vadd.f32 %v395, %v454
        %v463 = vadd.f32 %v396, %v455
        %v464 = vadd.f32 %v397, %v456
        %v465 = vadd.f32 %v398, %v457
        %v466 = vadd.f32 %v399, %v458
        %v467 = vmax.f32 %v443, 1e-24
        %v468 = vmax.f32 %v444, 1e-24
        %v469 = vmax.f32 %v445, 1e-24
        %v470 = vmax.f32 %v446, 1e-24
        %v471 = vmax.f32 %v447, 1e-24
        %v472 = vmax.f32 %v448, 1e-24
        %v473 = vmax.f32 %v449, 1e-24
        %v474 = vmax.f32 %v450, 1e-24
        %v475 = vrsqrt.pop %v467
        %v476 = vrsqrt.pop %v468
        %v477 = vrsqrt.pop %v469
        %v478 = vrsqrt.pop %v470
        %v479 = vrsqrt.pop %v471
        %v480 = vrsqrt.pop %v472
        %v481 = vrsqrt.pop %v473
        %v482 = vrsqrt.pop %v474
        %v483 = vmul.f32 %v427, %v475
        %v484 = vmul.f32 %v428, %v476
        %v485 = vmul.f32 %v429, %v477
        %v486 = vmul.f32 %v430, %v478
        %v487 = vmul.f32 %v431, %v479
        %v488 = vmul.f32 %v432, %v480
        %v489 = vmul.f32 %v433, %v481
        %v490 = vmul.f32 %v434, %v482
        %v491 = vmax.f32 %v459, 1e-24
        %v492 = vmax.f32 %v460, 1e-24
        %v493 = vmax.f32 %v461, 1e-24
        %v494 = vmax.f32 %v462, 1e-24
        %v495 = vmax.f32 %v463, 1e-24
        %v496 = vmax.f32 %v464, 1e-24
        %v497 = vmax.f32 %v465, 1e-24
        %v498 = vmax.f32 %v466, 1e-24
        %v499 = vrsqrt.pop %v491
        %v500 = vrsqrt.pop %v492
        %v501 = vrsqrt.pop %v493
        %v502 = vrsqrt.pop %v494
        %v503 = vrsqrt.pop %v495
        %v504 = vrsqrt.pop %v496
        %v505 = vrsqrt.pop %v497
        %v506 = vrsqrt.pop %v498
        %v507 = vmul.f32 %v483, %v499
        %v508 = vmul.f32 %v484, %v500
        %v509 = vmul.f32 %v485, %v501
        %v510 = vmul.f32 %v486, %v502
        %v511 = vmul.f32 %v487, %v503
        %v512 = vmul.f32 %v488, %v504
        %v513 = vmul.f32 %v489, %v505
        %v514 = vmul.f32 %v490, %v506
        %v515 = vadd.f32 %v507, %v508
        %v516 = vadd.f32 %v515, %v509
        %v517 = vadd.f32 %v516, %v510
        %v518 = vadd.f32 %v517, %v511
        %v519 = vadd.f32 %v518, %v512
        %v520 = vadd.f32 %v519, %v513
        %v521 = vadd.f32 %v520, %v514
        %v522 = vadd.f32 %v521, 0.0
        %523 = vst [vmem:[%s223] sm:$0xff] %v522
        %s524 = sand.u32 %s100, 1
        %s525 = scalar_lea.sflag [#allocation4], %s524
        %s526 = sand.u32 %s100, 1
        %s527 = smul.addr %s526, 8
        %s528 = scalar_lea.vmem [#allocation7], %s527
        // Predicated region
        $region37: #{tpu_custom_call.1} parent=27 // pred_check
          %p529 = pneg %p110
        $region38: #{tpu_custom_call.1} parent=27 // pred_check_branch
          %531 = sbr.rel (%p529) target = $region40
        $region39: #{tpu_custom_call.1} parent=27 // pred_region
          %s533 = ssub.s32 128, 128
          %534 = vsyncadd %s525, %s533
          %s535 = sadd.s32 %s27, %s26
          %s536 = smul.addr %s535, 128
          %s537 = scalar_lea.hbm %s2, %s536
          %s539 = sshll.u32 %s528, 4
          %s540 = int_to_ptr.vmem [resolvable:$true] %s539
          %542 = dma.vmem_to_hbm [thread:$0]  %s540, 128, %s537, %s525
        $region40: #{tpu_custom_call.1} parent=27 // pred_fallthru
          _
      $region28: #{tpu_custom_call.1} parent=5 // pred_fallthru
        _
      %p543 = scmp.le.s32.totalorder 2, %s17
      // Predicated region
      $region41: #{tpu_custom_call.1} parent=5 // pred_check
        %p544 = pneg %p543
      $region42: #{tpu_custom_call.1} parent=5 // pred_check_branch
        %546 = sbr.rel (%p544) target = $region44
      $region43: #{tpu_custom_call.1} parent=5 // pred_region
        %s547 = ssub.s32 %s17, 2
        // Predicated region
        $region45: #{tpu_custom_call.1} parent=43 // pred_check
          %p548 = pneg %p116
        $region46: #{tpu_custom_call.1} parent=43 // pred_check_branch
          %550 = sbr.rel (%p548) target = $region48
        $region47: #{tpu_custom_call.1} parent=43 // pred_region
          %s551 = sand.u32 %s101, 1
          %s552 = scalar_lea.sflag [#allocation4], %s551
          %s553 = sand.u32 %s101, 1
          %s554 = smul.addr %s553, 8
          %s555 = scalar_lea.vmem [#allocation7], %s554
          %556 = dma.done %s552, 128
        $region48: #{tpu_custom_call.1} parent=43 // pred_fallthru
          _
      $region44: #{tpu_custom_call.1} parent=5 // pred_fallthru
        _
    $region6: #{tpu_custom_call.1} parent=1 // loop_footer
      %s21 = sadd.s32 1, %s17
    $region7: #{tpu_custom_call.1} parent=1 // loop_footer_branch
      %16 = sbr.rel target = $region3
    $region8: #{tpu_custom_call.1} parent=1 // loop_exit
      _
    %557 = vsyncpa [#allocation3], 1
    %s558 = scalar_lea.sflag [#allocation3], 1
    %559 = vsyncpa %s558, 1
    %560 = vsyncpa [#allocation6], 1
    %s561 = scalar_lea.sflag [#allocation6], 1
    %562 = vsyncpa %s561, 1
    %563 = vsyncpa [#allocation4], 1
    %s564 = scalar_lea.sflag [#allocation4], 1
    %565 = vsyncpa %s564, 1

</llo_original>
